<compile_context>
chip_gen: v5e
topology: v5e:2x2
jax: 0.10.0
libtpu: 0.0.40
codegen_flags: <defaults>
</compile_context>

<pallas_src>
import jax
import jax.numpy as jnp
from jax.experimental import pallas as pl
from jax.experimental.pallas import tpu as pltpu

_LANES = 128
_TARGET_TILE_BYTES = 4 * 1024 * 1024   # ~4 MiB per buffer per tile
_MIN_SPLIT_ROWS = 1024                 # above this, force >= 2 grid steps
_VMEM_LIMIT_BYTES = 32 * 1024 * 1024   # fits 4x 4 MiB buffers + headroom on all chips


def _round_up(x, m):
    return ((x + m - 1) // m) * m


def _one_over_sqr_kernel(inv_w_ref, x_ref, o_ref):
    # inv_w_ref: (1,) f32 scalar in SMEM (scalar-prefetch operand).
    inv_w = inv_w_ref[0]
    z = x_ref[...].astype(jnp.float32) * inv_w          # x / w, computed in f32
    y = 1.0 / (1.0 + z * z)                              # exact; hidden under DMA
    o_ref[...] = y.astype(o_ref.dtype)


def one_over_sqr(x, w=1.0):
    """Compute 1/(1 + (x/w)^2) elementwise with a Pallas TPU kernel.

    x: any shape; flattened to a lane-dense (rows, 128) slab.
    Floating inputs keep their dtype on HBM I/O; integer inputs produce f32
    output (matching PyTorch's int/int -> float promotion). Math is f32.
    """
    orig_shape = x.shape
    in_dtype = x.dtype
    if jnp.issubdtype(in_dtype, jnp.floating):
        out_dtype = in_dtype
    else:
        out_dtype = jnp.float32  # PyTorch promotes integer division to float

    n = x.size
    itemsize = jnp.dtype(in_dtype).itemsize
    # Sublane packing multiple: 8 for 32-bit, 16 for 16-bit, 32 for 8-bit.
    sub = max(8, 256 // (itemsize * 8))
    # ~4 MiB tile per buffer, dtype-aware (8192 rows f32 / 16384 bf16 / 32768 i8).
    max_block_rows = max(sub, _TARGET_TILE_BYTES // (_LANES * itemsize))

    rows = pl.cdiv(n, _LANES)
    padded_n = rows * _LANES

    xf = jnp.ravel(x)
    lane_tail = padded_n != n
    if lane_tail:
        # Only the sub-128-element lane tail ever pays a pad copy.
        xf = jnp.pad(xf, (0, padded_n - n))
    x2d = xf.reshape(rows, _LANES)

    if rows <= _MIN_SPLIT_ROWS:
        # Small problem: single block (block == full array dims, so the
        # (8,128) divisibility rule does not apply).
        block_rows = rows
    else:
        # Force >= 2 grid steps (keeps both v7x TensorCores streaming) with
        # tiles capped at ~4 MiB.  The last block may be ragged; Pallas masks
        # it (safe for this elementwise op: padded lanes computed, discarded).
        block_rows = min(max_block_rows, _round_up(pl.cdiv(rows, 2), sub))
    grid = (pl.cdiv(rows, block_rows),)

    inv_w = jnp.reshape(1.0 / jnp.asarray(w, dtype=jnp.float32), (1,))

    y2d = pl.pallas_call(
        _one_over_sqr_kernel,
        out_shape=jax.ShapeDtypeStruct((rows, _LANES), out_dtype),
        grid_spec=pltpu.PrefetchScalarGridSpec(
            num_scalar_prefetch=1,
            grid=grid,
            in_specs=[
                pl.BlockSpec((block_rows, _LANES), lambda i, inv_w_ref: (i, 0)),
            ],
            out_specs=pl.BlockSpec((block_rows, _LANES), lambda i, inv_w_ref: (i, 0)),
        ),
        compiler_params=pltpu.CompilerParams(
            dimension_semantics=("parallel",),
            vmem_limit_bytes=_VMEM_LIMIT_BYTES,
        ),
    )(inv_w, x2d)

    if lane_tail:
        y = y2d.reshape(-1)[:n].reshape(orig_shape)
    else:
        y = y2d.reshape(orig_shape)
    return y


if __name__ == "__main__":
    key = jax.random.PRNGKey(0)
    # NCHW conv-style input: batch=2, channels=4, 16x16 spatial.
    x = jax.random.normal(key, (2, 4, 16, 16), dtype=jnp.float32)
    w = 1.0  # module default __init__ arg

    y = one_over_sqr(x, w)
    jax.block_until_ready(y)

    # Reference check (pure JAX). Exact reciprocal -> tight tolerance.
    y_ref = 1.0 / (1.0 + (x / w) ** 2)
    assert y.shape == y_ref.shape and y.dtype == y_ref.dtype
    assert jnp.allclose(y, y_ref, atol=1e-6, rtol=1e-6), "mismatch vs reference"

    print("KERNEL_OK")
</pallas_src>

<mosaic_0001>
module attributes {stable_mosaic.version = 11 : i64} {
  func.func @_one_over_sqr_kernel(%arg0: i32, %arg1: memref<1xf32, #tpu.memory_space<smem>>, %arg2: memref<16x128xf32, #tpu.memory_space<vmem>>, %arg3: memref<16x128xf32, #tpu.memory_space<vmem>>) attributes {dimension_semantics = [#tpu.dimension_semantics<parallel>], iteration_bounds = array<i64: 1>, scalar_prefetch = 1 : i64, scratch_operands = 0 : i64, tpu.core_type = #tpu.core_type<tc>, window_params = [{transform_indices = @transform_0, window_bounds = array<i64: 16, 128>}, {transform_indices = @transform_1, window_bounds = array<i64: 16, 128>}]} {
    %c0 = arith.constant 0 : index
    %0 = memref.load %arg1[%c0] : memref<1xf32, #tpu.memory_space<smem>>
    %c0_0 = arith.constant 0 : index
    %c0_1 = arith.constant 0 : index
    %1 = vector.load %arg2[%c0_0, %c0_1] : memref<16x128xf32, #tpu.memory_space<vmem>>, vector<16x128xf32>
    %2 = vector.broadcast %0 : f32 to vector<16x128xf32>
    %3 = arith.mulf %1, %2 : vector<16x128xf32>
    %4 = arith.mulf %3, %3 : vector<16x128xf32>
    %cst = arith.constant 1.000000e+00 : f32
    %5 = vector.broadcast %cst : f32 to vector<16x128xf32>
    %6 = arith.addf %5, %4 : vector<16x128xf32>
    %cst_2 = arith.constant 1.000000e+00 : f32
    %7 = vector.broadcast %cst_2 : f32 to vector<16x128xf32>
    %8 = arith.divf %7, %6 : vector<16x128xf32>
    %c0_3 = arith.constant 0 : index
    %c0_4 = arith.constant 0 : index
    %9 = vector.load %arg3[%c0_3, %c0_4] : memref<16x128xf32, #tpu.memory_space<vmem>>, vector<16x128xf32>
    tpu.vector_store %arg3[%c0_3, %c0_4], %8 {strides = array<i32>} : memref<16x128xf32, #tpu.memory_space<vmem>>, vector<16x128xf32>,
    return
  }
  func.func @transform_0(%arg0: i32, %arg1: memref<1xf32, #tpu.memory_space<smem>>) -> (i32, i32) {
    %c0_i32 = arith.constant 0 : i32
    %c0_i32_0 = arith.constant 0 : i32
    return %arg0, %c0_i32 : i32, i32
  }
  func.func @transform_1(%arg0: i32, %arg1: memref<1xf32, #tpu.memory_space<smem>>) -> (i32, i32) {
    %c0_i32 = arith.constant 0 : i32
    %c0_i32_0 = arith.constant 0 : i32
    return %arg0, %c0_i32 : i32, i32
  }
}

</mosaic_0001>

<llo_original>
// kernel: tpu_custom_call.1
$region0: #{tpu_custom_call.1}
  #allocation0 [shape = 'u32[]', space=smem, size = 0x4, offset = 0x4, fixed_abs, tag = 'smem constant byte address 0x4 - core index']
  #allocation1 [shape = 'u32[72,128]{1,0:T(1,128)}', space=vmem, size = 0x9000, scoped, tag = 'internal scratch']
  #allocation2 [shape = 's32[1]{0}', space=sflag, size = 0x4, scoped, tag = 'scoped memory for tpu_custom_call.1']
  #allocation3 [shape = 'f32[1]{0:T(128)S(6)}', space=smem, size = 0x200, scoped, tag = 'prefetched SMEM operand 0']
  %s0 = inlined_call_operand.<no memory space> [shape: f32[1], index: 0, kind: input, shape index: {}]
  %s1 = inlined_call_operand.hbm [shape: f32[16,128], index: 1, kind: input, shape index: {}]
  %s2 = inlined_call_operand.hbm [shape: f32[16,128], index: 2, kind: output, shape index: {}]
  %s3 = sld [smem:[#allocation0]]
  $region18: #{tpu_custom_call.1} parent=0
    _
  %s5 = ssub.s32 1, %s3
  %s6 = scalar_select 0, %s5, %s3
  %7 = sst [smem:[#allocation3]] %s0
  $region1: #{tpu_custom_call.1} parent=0
    #allocation4 [shape = 'u8[8192]{0}', space=vmem, size = 0x2000, scoped, tag = 'input window, operand 1, single buffered']
    #allocation5 [shape = 's32[1]{0}', space=sflag, size = 0x4, scoped, tag = 'scoped memory for tpu_custom_call.1']
    #allocation6 [shape = 's32[1]{0}', space=sflag, size = 0x4, scoped, tag = 'scoped memory for tpu_custom_call.1']
    #allocation7 [shape = 'u8[8192]{0}', space=vmem, size = 0x2000, scoped, tag = 'output window, operand 0, single buffered']
    %8 = vsyncpa [#allocation5], 0
    %9 = vsyncpa [#allocation6], 0
    // Predicated region
    $region2: #{tpu_custom_call.1} parent=1 // pred_check
      _
    $region3: #{tpu_custom_call.1} parent=1 // pred_check_branch
      %11 = sbr.rel (0) target = $region5
    $region4: #{tpu_custom_call.1} parent=1 // pred_region
      %13 = vsyncadd [#allocation5], 0
      %s14 = sshll.u32 %s1, 4
      %s15 = int_to_ptr.hbm [resolvable:$true] %s14
      %s16 = sshll.u32 [#allocation4], 4
      %s17 = int_to_ptr.vmem [resolvable:$true] %s16
      %22 = dma.hbm_to_vmem [thread:$0]  %s15, 256, %s17, [#allocation5], 128, 128, 8
    $region5: #{tpu_custom_call.1} parent=1 // pred_fallthru
      _
    // Predicated region
    $region6: #{tpu_custom_call.1} parent=1 // pred_check
      _
    $region7: #{tpu_custom_call.1} parent=1 // pred_check_branch
      %24 = sbr.rel (0) target = $region9
    $region8: #{tpu_custom_call.1} parent=1 // pred_region
      %26 = dma.done [#allocation5], 256
    $region9: #{tpu_custom_call.1} parent=1 // pred_fallthru
      _
    %s27 = sld [smem:[#allocation3]]
    %v28 = vld [vmem:[#allocation4] sm:$0xff]
    %v29 = vld [vmem:[#allocation4 + $0x8] sm:$0xff]
    %v30 = vstv %s27
    %v31 = vmul.f32 %v28, %v30
    %v32 = vmul.f32 %v29, %v30
    %v33 = vmul.f32 %v31, %v31
    %v34 = vmul.f32 %v32, %v32
    %v35 = vadd.f32 %v33, 1.0
    %v36 = vadd.f32 %v34, 1.0
    %v37 = vrcp.pop %v35
    %v38 = vmul.f32 %v35, %v37
    %v39 = vsub.f32 1.0, %v38
    %v40 = vmul.f32 %v37, %v39
    %v41 = vadd.f32 %v37, %v40
    %vm42 = vweird.f32 %v35
    %vm43 = vweird.f32 %v37
    %vm44 = vmor %vm42, %vm43
    %v45 = vsel %vm44, %v37, %v41
    %v46 = vand.u32 2147483647, %v35
    %vm47 = vcmp.eq.f32.partialorder %v46, 8.507059e+37
    %v48 = vand.u32 %v35, 2147483648
    %v49 = vor.u32 1.1754944e-38, %v48
    %v50 = vsel %vm47, %v49, %v45
    %v51 = vmul.f32 1.0, %v50
    %v52 = vrcp.pop %v36
    %v53 = vmul.f32 %v36, %v52
    %v54 = vsub.f32 1.0, %v53
    %v55 = vmul.f32 %v52, %v54
    %v56 = vadd.f32 %v52, %v55
    %vm57 = vweird.f32 %v36
    %vm58 = vweird.f32 %v52
    %vm59 = vmor %vm57, %vm58
    %v60 = vsel %vm59, %v52, %v56
    %v61 = vand.u32 2147483647, %v36
    %vm62 = vcmp.eq.f32.partialorder %v61, 8.507059e+37
    %v63 = vand.u32 %v36, 2147483648
    %v64 = vor.u32 1.1754944e-38, %v63
    %v65 = vsel %vm62, %v64, %v60
    %v66 = vmul.f32 1.0, %v65
    %67 = vst [vmem:[#allocation7] sm:$0xff] %v51
    %68 = vst [vmem:[#allocation7 + $0x8] sm:$0xff] %v66
    // Predicated region
    $region10: #{tpu_custom_call.1} parent=1 // pred_check
      _
    $region11: #{tpu_custom_call.1} parent=1 // pred_check_branch
      %70 = sbr.rel (0) target = $region13
    $region12: #{tpu_custom_call.1} parent=1 // pred_region
      %72 = vsyncadd [#allocation6], 0
      %s73 = sshll.u32 [#allocation7], 4
      %s74 = int_to_ptr.vmem [resolvable:$true] %s73
      %s75 = sshll.u32 %s2, 4
      %s76 = int_to_ptr.hbm [resolvable:$true] %s75
      %81 = dma.vmem_to_hbm [thread:$0]  %s74, 256, %s76, [#allocation6], 128, 128, 8
    $region13: #{tpu_custom_call.1} parent=1 // pred_fallthru
      _
    // Predicated region
    $region14: #{tpu_custom_call.1} parent=1 // pred_check
      _
    $region15: #{tpu_custom_call.1} parent=1 // pred_check_branch
      %83 = sbr.rel (0) target = $region17
    $region16: #{tpu_custom_call.1} parent=1 // pred_region
      %85 = dma.done [#allocation6], 256
    $region17: #{tpu_custom_call.1} parent=1 // pred_fallthru
      _
    %86 = vsyncpa [#allocation5], 1
    %87 = vsyncpa [#allocation6], 1

</llo_original>
